<compile_context>
chip_gen: v5e
topology: v5e:2x2
jax: 0.10.0
libtpu: 0.0.40
codegen_flags: <defaults>
</compile_context>

<pallas_src>
import jax
import jax.numpy as jnp
from jax.experimental import pallas as pl
from jax.experimental.pallas import tpu as pltpu

BN_EPS = 1e-5


def _round_up(x, m):
    return ((x + m - 1) // m) * m


def bn_linear_kernel(x_ref, w_ref, b_ref, o_ref, acc_ref):
    """Multi-k-step body: y_tile = x_tile @ W'_tile (+ b' at the last k step).

    x_ref:   (tm, tk)  input tile
    w_ref:   (tk, tn)  pre-transposed, BN-scaled weight tile (W'^T)
    b_ref:   (1,  tn)  folded bias row, f32
    o_ref:   (tm, tn)  output tile
    acc_ref: (tm, tn)  f32 accumulator scratch (resident across k)
    """
    k = pl.program_id(2)
    prod = jnp.dot(x_ref[...], w_ref[...], preferred_element_type=jnp.float32)

    @pl.when(k == 0)
    def _():
        acc_ref[...] = prod          # init with first matmul (no zero-fill)

    @pl.when(k > 0)
    def _():
        acc_ref[...] += prod

    @pl.when(k == pl.num_programs(2) - 1)
    def _():
        o_ref[...] = (acc_ref[...] + b_ref[...]).astype(o_ref.dtype)


def bn_linear_kernel_single_k(x_ref, w_ref, b_ref, o_ref):
    """Single-k-step body: no accumulator scratch needed."""
    o_ref[...] = (
        jnp.dot(x_ref[...], w_ref[...], preferred_element_type=jnp.float32)
        + b_ref[...]
    ).astype(o_ref.dtype)


def fused_bn_linear(x, gamma, beta, running_mean, running_var, weight, bias,
                    *, tm=512, tn=512, tk=1024, compute_dtype=None):
    """x: (N, F); gamma/beta/mean/var: (F,); weight: (O, F); bias: (O,).

    compute_dtype: matmul operand dtype. Defaults to x.dtype; pass jnp.bfloat16
    on v6e/v7x for full MXU rate when f32 accuracy of operands is not required
    (accumulation is always f32 via preferred_element_type).
    NOTE: the weight fold / transpose / pad below are inference-time constants —
    hoist them (e.g. close over them, or jit this wrapper) in a serving loop.
    """
    N, F = x.shape
    O = weight.shape[0]
    f32 = jnp.float32
    if compute_dtype is None:
        compute_dtype = x.dtype
    out_dtype = x.dtype

    # --- Fold eval-mode BN fully into the linear layer (same math as init_fusion()).
    scale = gamma.astype(f32) * jax.lax.rsqrt(running_var.astype(f32) + BN_EPS)  # (F,)
    shift = beta.astype(f32) - running_mean.astype(f32) * scale                  # (F,)
    bias_f = bias.astype(f32) + weight.astype(f32) @ shift                       # (O,)
    # Scale folded into the pre-transposed weight -> kernel body is a pure matmul.
    w_t = (weight.astype(f32) * scale[None, :]).T.astype(compute_dtype)          # (F, O)

    # --- Tile sizes: clamp to the (padded) problem, keep (8, 128) alignment.
    tm = min(tm, _round_up(N, 8))
    tn = min(tn, _round_up(O, 128))
    tk = min(tk, _round_up(F, 128))
    Np, Op, Fp = _round_up(N, tm), _round_up(O, tn), _round_up(F, tk)

    # --- Zero-pad only when needed (padded K contributes 0; padded rows/cols are
    # sliced off).  Output stays lane-dense (Op % 128 == 0).
    x_c = x.astype(compute_dtype)
    if Np == N and Fp == F:
        x_p = x_c
    else:
        x_p = jnp.zeros((Np, Fp), compute_dtype).at[:N, :F].set(x_c)
    if Fp == F and Op == O:
        w_p = w_t
    else:
        w_p = jnp.zeros((Fp, Op), compute_dtype).at[:F, :O].set(w_t)
    if Op == O:
        b_p = bias_f.reshape(1, O)
    else:
        b_p = jnp.zeros((1, Op), f32).at[0, :O].set(bias_f)

    gi, gj, gk = Np // tm, Op // tn, Fp // tk

    # --- Grid ordering: put the output-column axis first when the row axis has a
    # single tile, so v7x's two TensorCores both get parallel work.
    swap_ij = (gi == 1) and (gj >= 2)
    if swap_ij:
        grid = (gj, gi, gk)
        x_map = lambda j, i, k: (i, k)
        w_map = lambda j, i, k: (k, j)
        b_map = lambda j, i, k: (0, j)
        o_map = lambda j, i, k: (i, j)
    else:
        grid = (gi, gj, gk)
        x_map = lambda i, j, k: (i, k)
        w_map = lambda i, j, k: (k, j)
        b_map = lambda i, j, k: (0, j)
        o_map = lambda i, j, k: (i, j)

    single_k = gk == 1
    kernel = bn_linear_kernel_single_k if single_k else bn_linear_kernel
    scratch_shapes = [] if single_k else [pltpu.VMEM((tm, tn), jnp.float32)]

    # --- VMEM budget from the actual tile footprint (+50% headroom), capped at
    # 48 MiB so it stays safe on v7x's 64 MiB per-TC VMEM.  (On v6e, sweep tiles
    # and this cap upward if chasing the 918 TF/s roofline.)
    in_bytes = jnp.dtype(compute_dtype).itemsize
    out_bytes = jnp.dtype(out_dtype).itemsize
    footprint = (2 * (tm * tk + tk * tn) * in_bytes   # double-buffered x, W'
                 + 2 * tm * tn * out_bytes            # double-buffered output
                 + 2 * tn * 4)                        # bias row
    if not single_k:
        footprint += tm * tn * 4                      # f32 accumulator
    vmem_limit = min(max(int(1.5 * footprint), 32 << 20), 48 << 20)

    # Streamed traffic: x re-read per j tile, W' re-read per i tile, output once.
    bytes_accessed = (Np * Fp * gj * in_bytes
                      + Fp * Op * gi * in_bytes
                      + Np * Op * out_bytes
                      + Op * 4 * gi)

    out_p = pl.pallas_call(
        kernel,
        out_shape=jax.ShapeDtypeStruct((Np, Op), out_dtype),
        grid_spec=pltpu.PrefetchScalarGridSpec(
            num_scalar_prefetch=0,
            grid=grid,
            in_specs=[
                pl.BlockSpec((tm, tk), x_map),   # x tile
                pl.BlockSpec((tk, tn), w_map),   # BN-scaled W^T tile
                pl.BlockSpec((1, tn), b_map),    # folded bias row
            ],
            out_specs=pl.BlockSpec((tm, tn), o_map),
            scratch_shapes=scratch_shapes,
        ),
        compiler_params=pltpu.CompilerParams(
            dimension_semantics=("parallel", "parallel", "arbitrary"),
            vmem_limit_bytes=vmem_limit,
        ),
        cost_estimate=pl.CostEstimate(
            flops=2 * Np * Fp * Op,
            transcendentals=0,
            bytes_accessed=bytes_accessed,
        ),
    )(x_p, w_p, b_p)

    return out_p[:N, :O]


def reference(x, gamma, beta, running_mean, running_var, weight, bias):
    inv_std = jax.lax.rsqrt(running_var + BN_EPS)
    xn = (x - running_mean) * inv_std * gamma + beta
    return xn @ weight.T + bias


if __name__ == "__main__":
    # Small shapes consistent with BatchNorm1d(F) + Linear(F, O) on (N, F) input.
    N, F, O = 8, 32, 16
    key = jax.random.PRNGKey(0)
    kx, kg, kb, km, kv, kw, kbias = jax.random.split(key, 7)

    x = jax.random.normal(kx, (N, F), dtype=jnp.float32)
    gamma = jax.random.normal(kg, (F,), dtype=jnp.float32) * 0.1 + 1.0
    beta = jax.random.normal(kb, (F,), dtype=jnp.float32) * 0.1
    running_mean = jax.random.normal(km, (F,), dtype=jnp.float32) * 0.1
    running_var = jax.random.uniform(kv, (F,), dtype=jnp.float32, minval=0.5, maxval=1.5)
    weight = jax.random.normal(kw, (O, F), dtype=jnp.float32) / jnp.sqrt(F)
    bias = jax.random.normal(kbias, (O,), dtype=jnp.float32) * 0.1

    out = fused_bn_linear(x, gamma, beta, running_mean, running_var, weight, bias)
    out = jax.block_until_ready(out)

    ref = reference(x, gamma, beta, running_mean, running_var, weight, bias)
    assert out.shape == (N, O)
    assert jnp.allclose(out, ref, atol=1e-5, rtol=1e-5), "mismatch vs reference"

    print("KERNEL_OK")
</pallas_src>

<mosaic_0001>
module attributes {stable_mosaic.version = 11 : i64} {
  func.func @bn_linear_kernel_single_k(%arg0: i32, %arg1: i32, %arg2: i32, %arg3: memref<8x128xf32, #tpu.memory_space<vmem>>, %arg4: memref<128x128xf32, #tpu.memory_space<vmem>>, %arg5: memref<1x128xf32, #tpu.memory_space<vmem>>, %arg6: memref<8x128xf32, #tpu.memory_space<vmem>>) attributes {dimension_semantics = [#tpu.dimension_semantics<parallel>, #tpu.dimension_semantics<parallel>, #tpu.dimension_semantics<arbitrary>], iteration_bounds = array<i64: 1, 1, 1>, scalar_prefetch = 0 : i64, scratch_operands = 0 : i64, tpu.core_type = #tpu.core_type<tc>, window_params = [{transform_indices = @transform_0, window_bounds = array<i64: 8, 128>}, {transform_indices = @transform_1, window_bounds = array<i64: 128, 128>}, {transform_indices = @transform_2, window_bounds = array<i64: 1, 128>}, {transform_indices = @transform_3, window_bounds = array<i64: 8, 128>}]} {
    %c0 = arith.constant 0 : index
    %c0_0 = arith.constant 0 : index
    %0 = vector.load %arg3[%c0, %c0_0] : memref<8x128xf32, #tpu.memory_space<vmem>>, vector<8x128xf32>
    %c0_1 = arith.constant 0 : index
    %c0_2 = arith.constant 0 : index
    %1 = vector.load %arg4[%c0_1, %c0_2] : memref<128x128xf32, #tpu.memory_space<vmem>>, vector<128x128xf32>
    %cst = arith.constant dense<0.000000e+00> : vector<8x128xf32>
    %2 = tpu.matmul %0, %1, %cst {dimension_numbers = #tpu.dot_dimension_numbers<[1], [0], [0], [1], [0, 0, 1, 1], [], []>} : vector<8x128xf32>, vector<128x128xf32>, vector<8x128xf32> -> vector<8x128xf32>
    %c0_3 = arith.constant 0 : index
    %c0_4 = arith.constant 0 : index
    %3 = vector.load %arg5[%c0_3, %c0_4] : memref<1x128xf32, #tpu.memory_space<vmem>>, vector<1x128xf32>
    %4 = vector.broadcast %3 : vector<1x128xf32> to vector<8x128xf32>
    %5 = arith.addf %2, %4 : vector<8x128xf32>
    %c0_5 = arith.constant 0 : index
    %c0_6 = arith.constant 0 : index
    %6 = vector.load %arg6[%c0_5, %c0_6] : memref<8x128xf32, #tpu.memory_space<vmem>>, vector<8x128xf32>
    tpu.vector_store %arg6[%c0_5, %c0_6], %5 {strides = array<i32>} : memref<8x128xf32, #tpu.memory_space<vmem>>, vector<8x128xf32>,
    return
  }
  func.func @transform_0(%arg0: i32, %arg1: i32, %arg2: i32) -> (i32, i32) {
    %c0_i32 = arith.constant 0 : i32
    return %arg0, %arg2 : i32, i32
  }
  func.func @transform_1(%arg0: i32, %arg1: i32, %arg2: i32) -> (i32, i32) {
    %c0_i32 = arith.constant 0 : i32
    return %arg2, %arg1 : i32, i32
  }
  func.func @transform_2(%arg0: i32, %arg1: i32, %arg2: i32) -> (i32, i32) {
    %c0_i32 = arith.constant 0 : i32
    %c0_i32_0 = arith.constant 0 : i32
    return %c0_i32, %arg1 : i32, i32
  }
  func.func @transform_3(%arg0: i32, %arg1: i32, %arg2: i32) -> (i32, i32) {
    %c0_i32 = arith.constant 0 : i32
    return %arg0, %arg1 : i32, i32
  }
}

</mosaic_0001>

<llo_original>
// kernel: tpu_custom_call.1
$region0: #{tpu_custom_call.1}
  #allocation0 [shape = 'u32[]', space=smem, size = 0x4, offset = 0x4, fixed_abs, tag = 'smem constant byte address 0x4 - core index']
  #allocation1 [shape = 'u32[72,128]{1,0:T(1,128)}', space=vmem, size = 0x9000, scoped, tag = 'internal scratch']
  %s0 = inlined_call_operand.hbm [shape: f32[8,128], index: 0, kind: input, shape index: {}]
  %s1 = inlined_call_operand.hbm [shape: f32[128,128], index: 1, kind: input, shape index: {}]
  %s2 = inlined_call_operand.vmem [shape: f32[1,128], index: 2, kind: input, shape index: {}]
  %s3 = inlined_call_operand.hbm [shape: f32[8,128], index: 3, kind: output, shape index: {}]
  %s4 = sld [smem:[#allocation0]]
  $region30: #{tpu_custom_call.1} parent=0
    _
  %s6 = ssub.s32 1, %s4
  %s7 = scalar_select 0, %s6, %s4
  $region1: #{tpu_custom_call.1} parent=0
    #allocation2 [shape = 'u8[4096]{0}', space=vmem, size = 0x1000, scoped, tag = 'input window, operand 0, single buffered']
    #allocation3 [shape = 's32[1]{0}', space=sflag, size = 0x4, scoped, tag = 'scoped memory for tpu_custom_call.1']
    #allocation4 [shape = 's32[1]{0}', space=sflag, size = 0x4, scoped, tag = 'scoped memory for tpu_custom_call.1']
    #allocation5 [shape = 'u8[65536]{0}', space=vmem, size = 0x10000, scoped, tag = 'input window, operand 1, single buffered']
    #allocation6 [shape = 's32[1]{0}', space=sflag, size = 0x4, scoped, tag = 'scoped memory for tpu_custom_call.1']
    #allocation7 [shape = 'u8[4096]{0}', space=vmem, size = 0x1000, scoped, tag = 'output window, operand 0, single buffered']
    %8 = vsyncpa [#allocation3], 0
    %9 = vsyncpa [#allocation6], 0
    %10 = vsyncpa [#allocation4], 0
    // Predicated region
    $region2: #{tpu_custom_call.1} parent=1 // pred_check
      _
    $region3: #{tpu_custom_call.1} parent=1 // pred_check_branch
      %12 = sbr.rel (0) target = $region5
    $region4: #{tpu_custom_call.1} parent=1 // pred_region
      %14 = vsyncadd [#allocation3], 0
      %s16 = sshll.u32 %s0, 4
      %s17 = int_to_ptr.hbm [resolvable:$true] %s16
      %s18 = sshll.u32 [#allocation2], 4
      %s19 = int_to_ptr.vmem [resolvable:$true] %s18
      %21 = dma.hbm_to_vmem [thread:$0]  %s17, 128, %s19, [#allocation3]
    $region5: #{tpu_custom_call.1} parent=1 // pred_fallthru
      _
    // Predicated region
    $region6: #{tpu_custom_call.1} parent=1 // pred_check
      _
    $region7: #{tpu_custom_call.1} parent=1 // pred_check_branch
      %23 = sbr.rel (0) target = $region9
    $region8: #{tpu_custom_call.1} parent=1 // pred_region
      %25 = vsyncadd [#allocation6], 0
      %s26 = sshll.u32 %s1, 4
      %s27 = int_to_ptr.hbm [resolvable:$true] %s26
      %s28 = sshll.u32 [#allocation5], 4
      %s29 = int_to_ptr.vmem [resolvable:$true] %s28
      %34 = dma.hbm_to_vmem [thread:$0]  %s27, 2048, %s29, [#allocation6], 128, 128, 8
    $region9: #{tpu_custom_call.1} parent=1 // pred_fallthru
      _
    // Predicated region
    $region10: #{tpu_custom_call.1} parent=1 // pred_check
      _
    $region11: #{tpu_custom_call.1} parent=1 // pred_check_branch
      %36 = sbr.rel (0) target = $region13
    $region12: #{tpu_custom_call.1} parent=1 // pred_region
      _
    $region13: #{tpu_custom_call.1} parent=1 // pred_fallthru
      _
    // Predicated region
    $region14: #{tpu_custom_call.1} parent=1 // pred_check
      _
    $region15: #{tpu_custom_call.1} parent=1 // pred_check_branch
      %38 = sbr.rel (0) target = $region17
    $region16: #{tpu_custom_call.1} parent=1 // pred_region
      %40 = dma.done [#allocation3], 128
    $region17: #{tpu_custom_call.1} parent=1 // pred_fallthru
      _
    // Predicated region
    $region18: #{tpu_custom_call.1} parent=1 // pred_check
      _
    $region19: #{tpu_custom_call.1} parent=1 // pred_check_branch
      %42 = sbr.rel (0) target = $region21
    $region20: #{tpu_custom_call.1} parent=1 // pred_region
      %44 = dma.done [#allocation6], 2048
    $region21: #{tpu_custom_call.1} parent=1 // pred_fallthru
      _
    %v45 = vld [vmem:[#allocation2] sm:$0xff]
    %v46 = vld [vmem:[#allocation5] sm:$0xff]
    %v47 = vld [vmem:[#allocation5 + $0x8] sm:$0xff]
    %v48 = vld [vmem:[#allocation5 + $0x10] sm:$0xff]
    %v49 = vld [vmem:[#allocation5 + $0x18] sm:$0xff]
    %v50 = vld [vmem:[#allocation5 + $0x20] sm:$0xff]
    %v51 = vld [vmem:[#allocation5 + $0x28] sm:$0xff]
    %v52 = vld [vmem:[#allocation5 + $0x30] sm:$0xff]
    %v53 = vld [vmem:[#allocation5 + $0x38] sm:$0xff]
    %v54 = vld [vmem:[#allocation5 + $0x40] sm:$0xff]
    %v55 = vld [vmem:[#allocation5 + $0x48] sm:$0xff]
    %v56 = vld [vmem:[#allocation5 + $0x50] sm:$0xff]
    %v57 = vld [vmem:[#allocation5 + $0x58] sm:$0xff]
    %v58 = vld [vmem:[#allocation5 + $0x60] sm:$0xff]
    %v59 = vld [vmem:[#allocation5 + $0x68] sm:$0xff]
    %v60 = vld [vmem:[#allocation5 + $0x70] sm:$0xff]
    %v61 = vld [vmem:[#allocation5 + $0x78] sm:$0xff]
    %v62 = vld [vmem:[%s2] sm:$0x1]
    %v64 = vperm.slane %v62, 0
    %66 = vmatpush.msra.mxu0 %v61
    %67 = vmatpush.msra.mxu0 %v60
    %68 = vmatpush.msra.mxu0 %v59
    %69 = vmatpush.msra.mxu0 %v58
    %70 = vmatpush.msra.mxu0 %v57
    %71 = vmatpush.msra.mxu0 %v56
    %72 = vmatpush.msra.mxu0 %v55
    %73 = vmatpush.msra.mxu0 %v54
    %74 = vmatpush.msra.mxu0 %v53
    %75 = vmatpush.msra.mxu0 %v52
    %76 = vmatpush.msra.mxu0 %v51
    %77 = vmatpush.msra.mxu0 %v50
    %78 = vmatpush.msra.mxu0 %v49
    %79 = vmatpush.msra.mxu0 %v48
    %80 = vmatpush.msra.mxu0 %v47
    %81 = vmatpush.msra.mxu0 %v46
    %82 = vmatmul.f32.gmra.mxu0 %v45
    %v83 = vpop.f32.mrf.mxu0
    %v84 = vadd.f32 %v64, %v83
    %85 = vdwg.mxu0
    %86 = vst [vmem:[#allocation7] sm:$0xff] %v84
    // Predicated region
    $region22: #{tpu_custom_call.1} parent=1 // pred_check
      _
    $region23: #{tpu_custom_call.1} parent=1 // pred_check_branch
      %88 = sbr.rel (0) target = $region25
    $region24: #{tpu_custom_call.1} parent=1 // pred_region
      %90 = vsyncadd [#allocation4], 0
      %s92 = sshll.u32 [#allocation7], 4
      %s93 = int_to_ptr.vmem [resolvable:$true] %s92
      %s94 = sshll.u32 %s3, 4
      %s95 = int_to_ptr.hbm [resolvable:$true] %s94
      %97 = dma.vmem_to_hbm [thread:$0]  %s93, 128, %s95, [#allocation4]
    $region25: #{tpu_custom_call.1} parent=1 // pred_fallthru
      _
    // Predicated region
    $region26: #{tpu_custom_call.1} parent=1 // pred_check
      _
    $region27: #{tpu_custom_call.1} parent=1 // pred_check_branch
      %99 = sbr.rel (0) target = $region29
    $region28: #{tpu_custom_call.1} parent=1 // pred_region
      %101 = dma.done [#allocation4], 128
    $region29: #{tpu_custom_call.1} parent=1 // pred_fallthru
      _
    %102 = vsyncpa [#allocation3], 1
    %103 = vsyncpa [#allocation6], 1
    %104 = vsyncpa [#allocation4], 1

</llo_original>
